<compile_context>
chip_gen: v7x
topology: tpu7x:2x2x1
jax: 0.10.0
libtpu: 0.0.40
codegen_flags: <defaults>
</compile_context>

<pallas_src>
import jax
import jax.numpy as jnp
from jax import lax
from jax.experimental import pallas as pl
from jax.experimental.pallas import tpu as pltpu


# ---------------------------------------------------------------------------
# Kernels
# ---------------------------------------------------------------------------

def _ip_batched_kernel(x_ref, y_ref, out_ref):
    """x_ref, y_ref: (bt, N, D); out_ref: (bt, N, N)."""
    # bmm(x, y.permute(0, 2, 1)) == contract last dims, batch over dim 0.
    out_ref[...] = lax.dot_general(
        x_ref[...], y_ref[...],
        dimension_numbers=(((2,), (2,)), ((0,), (0,))),
        preferred_element_type=jnp.float32,
    ).astype(out_ref.dtype)


def _ip_tiled_kernel(x_ref, y_ref, out_ref):
    """Single-K tiled: x_ref (1, tm, D), y_ref (1, tn, D), out_ref (1, tm, tn)."""
    out_ref[0, :, :] = lax.dot_general(
        x_ref[0], y_ref[0],
        dimension_numbers=(((1,), (1,)), ((), ())),
        preferred_element_type=jnp.float32,
    ).astype(out_ref.dtype)


def _ip_tiled_acc_kernel(x_ref, y_ref, out_ref, acc_ref):
    """K-tiled: x_ref (1, tm, tk), y_ref (1, tn, tk), out (1, tm, tn), acc f32."""
    @pl.when(pl.program_id(3) == 0)
    def _init():
        acc_ref[...] = jnp.zeros_like(acc_ref)

    acc_ref[...] += lax.dot_general(
        x_ref[0], y_ref[0],
        dimension_numbers=(((1,), (1,)), ((), ())),
        preferred_element_type=jnp.float32,
    )

    @pl.when(pl.program_id(3) == pl.num_programs(3) - 1)
    def _store():
        out_ref[0, :, :] = acc_ref[...].astype(out_ref.dtype)


# ---------------------------------------------------------------------------
# Budget / tiling helpers (all plain Python, evaluated at trace time)
# ---------------------------------------------------------------------------

_FALLBACK_VMEM = 64 << 20      # most conservative generation (v7x per-TC VMEM)
_VMEM_HEADROOM = 8 << 20


def _vmem_capacity_bytes():
    try:
        info = pltpu.get_tpu_info()
        cap = int(getattr(info, "vmem_capacity_bytes", 0) or 0)
        if cap > 0:
            return cap
    except Exception:
        pass
    return _FALLBACK_VMEM


def _pick_tk(d, max_tk):
    """Contraction tile: a multiple of 128 dividing D, else the whole of D."""
    if d % 128 != 0 or d <= max_tk:
        return d
    t = max_tk - (max_tk % 128)
    while t >= 128:
        if d % t == 0:
            return t
        t -= 128
    return d


def _tile_candidates(n, mult, cap):
    cands = [t for t in range(mult, min(n, cap) + 1, mult) if n % t == 0]
    if not cands:
        cands = [n]                       # full-dim block is always legal
    return sorted(set(cands), reverse=True)


def _tiled_footprint(tm, tn, tk, kd, itemsize):
    fp = 2 * (tm + tn) * tk * itemsize    # double-buffered x / y blocks
    fp += 2 * tm * tn * itemsize          # double-buffered output block
    if kd > 1:
        fp += tm * tn * 4                 # f32 accumulator scratch
    return fp


def _pick_mn_tiles(n, tk, kd, itemsize, budget, max_tile):
    cap = max_tile if max_tile is not None else 4096
    tn_cands = _tile_candidates(n, 128, cap)    # lane-dense output last dim
    tm_cands = _tile_candidates(n, 8, cap)
    best = None
    for tn in tn_cands:
        for tm in tm_cands:
            if _tiled_footprint(tm, tn, tk, kd, itemsize) > budget:
                continue
            score = (tm * tn, -abs(tm - tn))
            if best is None or score > best[0]:
                best = (score, tm, tn)
    if best is None:                      # pathological shape: take smallest
        return tm_cands[-1], tn_cands[-1]
    return best[1], best[2]


# ---------------------------------------------------------------------------
# Wrapper
# ---------------------------------------------------------------------------

def inner_product(inp, *, _force_tiled=False, _max_tk=2048, _max_tile=None):
    """InnerProduct.forward: (B, N, 2*D) array -> flat (B*N*N,) array.

    The underscore kwargs are test hooks only (force the tiled path / shrink
    tiles so every code path is exercised at small shapes).
    """
    B, N, D2 = inp.shape
    assert D2 % 2 == 0, "last dim must be even (chunked into 2 along dim=2)"
    D = D2 // 2
    itemsize = jnp.dtype(inp.dtype).itemsize

    vmem_cap = _vmem_capacity_bytes()
    vmem_limit = int(max(vmem_cap - _VMEM_HEADROOM, vmem_cap // 2))
    tile_budget = int(0.75 * vmem_limit)
    batched_budget = min(tile_budget, vmem_cap // 5)   # ~25 MiB v5e/v6e, ~12 MiB v7x

    lane_split = (D % 128 == 0)           # x/y split expressible as BlockSpec blocks
    per_batch_bytes = itemsize * (2 * N * D + N * N)

    use_tiled = _force_tiled or (2 * per_batch_bytes > batched_budget and N % 8 == 0)

    if use_tiled:
        # ---------------- tiled path (N-tiled, optionally K-tiled) ----------------
        tk = _pick_tk(D, _max_tk) if lane_split else D   # unaligned D: full-D block
        kd = D // tk
        tm, tn = _pick_mn_tiles(N, tk, kd, itemsize, tile_budget, _max_tile)
        nm, nn = N // tm, N // tn
        y_off = kd if lane_split else 0

        if lane_split:
            arrays = (inp, inp)                           # free split via block index
        else:
            arrays = (inp[:, :, :D], inp[:, :, D:])       # one-time XLA slice copy

        if B >= nm:   # lead with the larger parallel extent (v7x megacore balance)
            grid = (B, nm, nn, kd)
            x_map = lambda b, i, j, k: (b, i, k)
            y_map = lambda b, i, j, k: (b, j, y_off + k)
            o_map = lambda b, i, j, k: (b, i, j)
        else:
            grid = (nm, nn, B, kd)
            x_map = lambda i, j, b, k: (b, i, k)
            y_map = lambda i, j, b, k: (b, j, y_off + k)
            o_map = lambda i, j, b, k: (b, i, j)

        cost = pl.CostEstimate(
            flops=2 * B * N * N * D,
            transcendentals=0,
            bytes_accessed=itemsize * (B * N * D * (nn if kd > 1 else 1)  # x reads
                                       + B * nm * N * D                   # y re-reads
                                       + B * N * N),                      # out writes
        )
        kernel = _ip_tiled_acc_kernel if kd > 1 else _ip_tiled_kernel
        scratch = [pltpu.VMEM((tm, tn), jnp.float32)] if kd > 1 else []

        xy = pl.pallas_call(
            kernel,
            out_shape=jax.ShapeDtypeStruct((B, N, N), inp.dtype),
            grid=grid,
            in_specs=[pl.BlockSpec((1, tm, tk), x_map),
                      pl.BlockSpec((1, tn, tk), y_map)],
            out_specs=pl.BlockSpec((1, tm, tn), o_map),
            scratch_shapes=scratch,
            compiler_params=pltpu.CompilerParams(
                dimension_semantics=("parallel", "parallel", "parallel", "arbitrary"),
                vmem_limit_bytes=vmem_limit),
            cost_estimate=cost,
        )(*arrays)
        # torch.flatten: contiguous metadata reshape, free outside the kernel.
        return xy.reshape(-1)

    # ---------------- batched (small-shape) path ----------------
    bt_max = max(1, min(B, 1024, batched_budget // max(1, 2 * per_batch_bytes)))
    if B <= bt_max:
        bt, Bp = B, B
    else:
        div = 1
        for c in range(bt_max, 0, -1):
            if B % c == 0:
                div = c
                break
        if 2 * div >= bt_max:             # divisor is good enough: no padding
            bt, Bp = div, B
        else:                             # pad B so bt stays large (prime/odd B)
            bt = bt_max
            Bp = bt * ((B + bt - 1) // bt)

    if lane_split:
        src = inp
        if Bp > B:
            src = jnp.pad(src, ((0, Bp - B), (0, 0), (0, 0)))
        arrays = (src, src)
        x_spec = pl.BlockSpec((bt, N, D), lambda b: (b, 0, 0))
        y_spec = pl.BlockSpec((bt, N, D), lambda b: (b, 0, 1))   # upper half of last dim
    else:
        x_arr, y_arr = inp[:, :, :D], inp[:, :, D:]
        if Bp > B:
            x_arr = jnp.pad(x_arr, ((0, Bp - B), (0, 0), (0, 0)))
            y_arr = jnp.pad(y_arr, ((0, Bp - B), (0, 0), (0, 0)))
        arrays = (x_arr, y_arr)
        x_spec = pl.BlockSpec((bt, N, D), lambda b: (b, 0, 0))
        y_spec = pl.BlockSpec((bt, N, D), lambda b: (b, 0, 0))

    cost = pl.CostEstimate(
        flops=2 * Bp * N * N * D,
        transcendentals=0,
        bytes_accessed=itemsize * Bp * (2 * N * D + N * N),
    )
    xy = pl.pallas_call(
        _ip_batched_kernel,
        out_shape=jax.ShapeDtypeStruct((Bp, N, N), inp.dtype),
        grid=(Bp // bt,),
        in_specs=[x_spec, y_spec],
        out_specs=pl.BlockSpec((bt, N, N), lambda b: (b, 0, 0)),
        compiler_params=pltpu.CompilerParams(
            dimension_semantics=("parallel",),
            vmem_limit_bytes=vmem_limit),
        cost_estimate=cost,
    )(*arrays)
    if Bp > B:
        xy = xy[:B]
    return xy.reshape(-1)


# ---------------------------------------------------------------------------
# Self-test
# ---------------------------------------------------------------------------

def _ref(inp):
    d = inp.shape[-1] // 2
    return jnp.einsum("bnd,bmd->bnm", inp[:, :, :d], inp[:, :, d:],
                      precision=lax.Precision.HIGHEST).reshape(-1)


def _check(name, out, ref, tol):
    assert out.shape == ref.shape, (name, out.shape, ref.shape)
    err = float(jnp.max(jnp.abs(out - ref)))
    assert jnp.allclose(out, ref, atol=tol, rtol=tol), (name, err)


if __name__ == "__main__":
    key = jax.random.PRNGKey(0)
    k1, k2, k3, k4, k5 = jax.random.split(key, 5)

    # 1) Tiny shapes -> batched path, wrapper-split x/y (D not lane-aligned).
    x1 = jax.random.normal(k1, (2, 8, 32), dtype=jnp.float32)
    o1 = inner_product(x1)
    jax.block_until_ready(o1)
    _check("batched/unaligned", o1, _ref(x1), 1e-4)

    # 2) Lane-aligned D -> batched path with BlockSpec x/y split (no HBM copy).
    x2 = jax.random.normal(k2, (2, 128, 256), dtype=jnp.float32)
    o2 = inner_product(x2)
    jax.block_until_ready(o2)
    _check("batched/aligned", o2, _ref(x2), 5e-3)

    # 3) Tiled path with K-tiling (accumulator kernel), forced at small shape.
    x3 = jax.random.normal(k3, (2, 256, 512), dtype=jnp.float32)
    o3 = inner_product(x3, _force_tiled=True, _max_tk=128, _max_tile=128)
    jax.block_until_ready(o3)
    _check("tiled/k-tiled", o3, _ref(x3), 1e-2)

    # 4) Tiled path, single-K, N-tiled, N//tm > B grid ordering.
    x4 = jax.random.normal(k4, (1, 256, 512), dtype=jnp.float32)
    o4 = inner_product(x4, _force_tiled=True, _max_tile=128)
    jax.block_until_ready(o4)
    _check("tiled/plain", o4, _ref(x4), 1e-2)

    # 5) Tiled path with wrapper-split halves (D not lane-aligned).
    x5 = jax.random.normal(k5, (2, 64, 96), dtype=jnp.float32)
    o5 = inner_product(x5, _force_tiled=True)
    jax.block_until_ready(o5)
    _check("tiled/unaligned", o5, _ref(x5), 1e-3)

    print("KERNEL_OK")
</pallas_src>

<mosaic_0001>
module attributes {stable_mosaic.version = 11 : i64} {
  func.func @_ip_batched_kernel(%arg0: i32, %arg1: memref<2x8x16xf32, #tpu.memory_space<vmem>>, %arg2: memref<2x8x16xf32, #tpu.memory_space<vmem>>, %arg3: memref<2x8x8xf32, #tpu.memory_space<vmem>>) attributes {dimension_semantics = [#tpu.dimension_semantics<parallel>], iteration_bounds = array<i64: 1>, scalar_prefetch = 0 : i64, scratch_operands = 0 : i64, tpu.core_type = #tpu.core_type<tc>, window_params = [{transform_indices = @transform_0, window_bounds = array<i64: 2, 8, 16>}, {transform_indices = @transform_1, window_bounds = array<i64: 2, 8, 16>}, {transform_indices = @transform_2, window_bounds = array<i64: 2, 8, 8>}]} {
    %c0 = arith.constant 0 : index
    %c0_0 = arith.constant 0 : index
    %c0_1 = arith.constant 0 : index
    %0 = vector.load %arg1[%c0, %c0_0, %c0_1] : memref<2x8x16xf32, #tpu.memory_space<vmem>>, vector<2x8x16xf32>
    %c0_2 = arith.constant 0 : index
    %c0_3 = arith.constant 0 : index
    %c0_4 = arith.constant 0 : index
    %1 = vector.load %arg2[%c0_2, %c0_3, %c0_4] : memref<2x8x16xf32, #tpu.memory_space<vmem>>, vector<2x8x16xf32>
    %cst = arith.constant dense<0.000000e+00> : vector<2x8x8xf32>
    %2 = tpu.matmul %0, %1, %cst {dimension_numbers = #tpu.dot_dimension_numbers<[2], [2], [1], [1], [0, 0, 0, 1, 1, 1], [0], [0]>} : vector<2x8x16xf32>, vector<2x8x16xf32>, vector<2x8x8xf32> -> vector<2x8x8xf32>
    %c0_5 = arith.constant 0 : index
    %c0_6 = arith.constant 0 : index
    %c0_7 = arith.constant 0 : index
    %3 = vector.load %arg3[%c0_5, %c0_6, %c0_7] : memref<2x8x8xf32, #tpu.memory_space<vmem>>, vector<2x8x8xf32>
    tpu.vector_store %arg3[%c0_5, %c0_6, %c0_7], %2 {strides = array<i32>} : memref<2x8x8xf32, #tpu.memory_space<vmem>>, vector<2x8x8xf32>,
    return
  }
  func.func @transform_0(%arg0: i32) -> (i32, i32, i32) {
    %c0_i32 = arith.constant 0 : i32
    %c0_i32_0 = arith.constant 0 : i32
    %c0_i32_1 = arith.constant 0 : i32
    return %arg0, %c0_i32, %c0_i32_0 : i32, i32, i32
  }
  func.func @transform_1(%arg0: i32) -> (i32, i32, i32) {
    %c0_i32 = arith.constant 0 : i32
    %c0_i32_0 = arith.constant 0 : i32
    %c0_i32_1 = arith.constant 0 : i32
    return %arg0, %c0_i32, %c0_i32_0 : i32, i32, i32
  }
  func.func @transform_2(%arg0: i32) -> (i32, i32, i32) {
    %c0_i32 = arith.constant 0 : i32
    %c0_i32_0 = arith.constant 0 : i32
    %c0_i32_1 = arith.constant 0 : i32
    return %arg0, %c0_i32, %c0_i32_0 : i32, i32, i32
  }
}

</mosaic_0001>

<llo_original>
// kernel: tpu_custom_call.1
$region0: #{tpu_custom_call.1}
  #allocation0 [shape = 'u32[]', space=smem, size = 0x4, offset = 0x4, fixed_abs, tag = 'smem constant byte address 0x4 - core index']
  #allocation1 [shape = 'u32[144,128]{1,0:T(1,128)}', space=vmem, size = 0x12000, scoped, tag = 'internal scratch']
  %s0 = inlined_call_operand.hbm [shape: f32[2,8,16], index: 0, kind: input, shape index: {}]
  %s1 = inlined_call_operand.hbm [shape: f32[2,8,16], index: 1, kind: input, shape index: {}]
  %s2 = inlined_call_operand.hbm [shape: f32[2,8,8], index: 2, kind: output, shape index: {}]
  %s3 = sld [smem:[#allocation0]]
  $region26: #{tpu_custom_call.1} parent=0
    _
  %s5 = ssub.s32 1, %s3
  %s6 = scalar_select 0, %s5, %s3
  $region1: #{tpu_custom_call.1} parent=0
    #allocation2 [shape = 'u8[8192]{0}', space=vmem, size = 0x2000, scoped, tag = 'input window, operand 0, single buffered']
    #allocation3 [shape = 's32[1]{0}', space=sflag, size = 0x4, scoped, tag = 'scoped memory for tpu_custom_call.1']
    #allocation4 [shape = 's32[1]{0}', space=sflag, size = 0x4, scoped, tag = 'scoped memory for tpu_custom_call.1']
    #allocation5 [shape = 'u8[8192]{0}', space=vmem, size = 0x2000, scoped, tag = 'input window, operand 1, single buffered']
    #allocation6 [shape = 's32[1]{0}', space=sflag, size = 0x4, scoped, tag = 'scoped memory for tpu_custom_call.1']
    #allocation7 [shape = 'u8[8192]{0}', space=vmem, size = 0x2000, scoped, tag = 'output window, operand 0, single buffered']
    %7 = vsyncpa [#allocation3], 0
    %8 = vsyncpa [#allocation6], 0
    %9 = vsyncpa [#allocation4], 0
    // Predicated region
    $region2: #{tpu_custom_call.1} parent=1 // pred_check
      _
    $region3: #{tpu_custom_call.1} parent=1 // pred_check_branch
      %11 = sbr.rel (0) target = $region5
    $region4: #{tpu_custom_call.1} parent=1 // pred_region
      %s13 = ssub.s32 256, 256
      %14 = vsyncadd [#allocation3], %s13
      %s15 = sshll.u32 [#allocation2], 4
      %s16 = int_to_ptr.vmem [resolvable:$true] %s15
      %21 = dma.hbm_to_vmem [thread:$0]  %s0, 256, %s16, [#allocation3], 128, 128, 8
    $region5: #{tpu_custom_call.1} parent=1 // pred_fallthru
      _
    // Predicated region
    $region6: #{tpu_custom_call.1} parent=1 // pred_check
      _
    $region7: #{tpu_custom_call.1} parent=1 // pred_check_branch
      %23 = sbr.rel (0) target = $region9
    $region8: #{tpu_custom_call.1} parent=1 // pred_region
      %s25 = ssub.s32 256, 256
      %26 = vsyncadd [#allocation6], %s25
      %s27 = sshll.u32 [#allocation5], 4
      %s28 = int_to_ptr.vmem [resolvable:$true] %s27
      %33 = dma.hbm_to_vmem [thread:$0]  %s1, 256, %s28, [#allocation6], 128, 128, 8
    $region9: #{tpu_custom_call.1} parent=1 // pred_fallthru
      _
    // Predicated region
    $region10: #{tpu_custom_call.1} parent=1 // pred_check
      _
    $region11: #{tpu_custom_call.1} parent=1 // pred_check_branch
      %35 = sbr.rel (0) target = $region13
    $region12: #{tpu_custom_call.1} parent=1 // pred_region
      %36 = dma.done [#allocation3], 256
    $region13: #{tpu_custom_call.1} parent=1 // pred_fallthru
      _
    // Predicated region
    $region14: #{tpu_custom_call.1} parent=1 // pred_check
      _
    $region15: #{tpu_custom_call.1} parent=1 // pred_check_branch
      %38 = sbr.rel (0) target = $region17
    $region16: #{tpu_custom_call.1} parent=1 // pred_region
      %39 = dma.done [#allocation6], 256
    $region17: #{tpu_custom_call.1} parent=1 // pred_fallthru
      _
    %v40 = vld [vmem:[#allocation2] sm:$0xff]
    %v41 = vld [vmem:[#allocation2 + $0x8] sm:$0xff]
    %v42 = vld [vmem:[#allocation5] sm:$0xff]
    %v43 = vld [vmem:[#allocation5 + $0x8] sm:$0xff]
    %vm44 = vcmask 130048
    %v46 = vsel %vm44, %v40, 0
    %v49 = vsel %vm44, %v42, 0
    %51 = vmatprep.subr.mxu0 0.0
    %52 = vmatpush1.xpose.msra.mxu0 %v49
    %53 = vmatprep.subr.mxu0 0.0
    %54 = vmatpush1.xpose.msra.mxu0 0.0
    %55 = vmatprep.subr.mxu0 0.0
    %56 = vmatpush1.xpose.msra.mxu0 0.0
    %57 = vmatprep.subr.mxu0 0.0
    %58 = vmatpush1.xpose.msra.mxu0 0.0
    %59 = vmatprep.subr.mxu0 0.0
    %60 = vmatpush1.xpose.msra.mxu0 0.0
    %61 = vmatprep.subr.mxu0 0.0
    %62 = vmatpush1.xpose.msra.mxu0 0.0
    %63 = vmatprep.subr.mxu0 0.0
    %64 = vmatpush1.xpose.msra.mxu0 0.0
    %65 = vmatprep.subr.mxu0 0.0
    %66 = vmatpush1.xpose.msra.mxu0 0.0
    %67 = vmatprep.subr.mxu0 0.0
    %68 = vmatpush1.xpose.msra.mxu0 0.0
    %69 = vmatprep.subr.mxu0 0.0
    %70 = vmatpush1.xpose.msra.mxu0 0.0
    %71 = vmatprep.subr.mxu0 0.0
    %72 = vmatpush1.xpose.msra.mxu0 0.0
    %73 = vmatprep.subr.mxu0 0.0
    %74 = vmatpush1.xpose.msra.mxu0 0.0
    %75 = vmatprep.subr.mxu0 0.0
    %76 = vmatpush1.xpose.msra.mxu0 0.0
    %77 = vmatprep.subr.mxu0 0.0
    %78 = vmatpush1.xpose.msra.mxu0 0.0
    %79 = vmatprep.subr.mxu0 0.0
    %80 = vmatpush1.xpose.msra.mxu0 0.0
    %81 = vmatprep.subr.mxu0 0.0
    %82 = vmatpush1.xpose.msra.mxu0 0.0
    %83 = vmatprep.subr.mxu0 0.0
    %84 = vmatpush1.xpose.msra.mxu0 0.0
    %85 = vmatprep.subr.mxu0 0.0
    %86 = vmatpush1.xpose.msra.mxu0 0.0
    %87 = vmatprep.subr.mxu0 0.0
    %88 = vmatpush1.xpose.msra.mxu0 0.0
    %89 = vmatprep.subr.mxu0 0.0
    %90 = vmatpush1.xpose.msra.mxu0 0.0
    %91 = vmatprep.subr.mxu0 0.0
    %92 = vmatpush1.xpose.msra.mxu0 0.0
    %93 = vmatprep.subr.mxu0 0.0
    %94 = vmatpush1.xpose.msra.mxu0 0.0
    %95 = vmatprep.subr.mxu0 0.0
    %96 = vmatpush1.xpose.msra.mxu0 0.0
    %97 = vmatprep.subr.mxu0 0.0
    %98 = vmatpush1.xpose.msra.mxu0 0.0
    %99 = vmatprep.subr.mxu0 0.0
    %100 = vmatpush1.xpose.msra.mxu0 0.0
    %101 = vmatprep.subr.mxu0 0.0
    %102 = vmatpush1.xpose.msra.mxu0 0.0
    %103 = vmatprep.subr.mxu0 0.0
    %104 = vmatpush1.xpose.msra.mxu0 0.0
    %105 = vmatprep.subr.mxu0 0.0
    %106 = vmatpush1.xpose.msra.mxu0 0.0
    %107 = vmatprep.subr.mxu0 0.0
    %108 = vmatpush1.xpose.msra.mxu0 0.0
    %109 = vmatprep.subr.mxu0 0.0
    %110 = vmatpush1.xpose.msra.mxu0 0.0
    %111 = vmatprep.subr.mxu0 0.0
    %112 = vmatpush1.xpose.msra.mxu0 0.0
    %113 = vmatprep.subr.mxu0 0.0
    %114 = vmatpush1.xpose.msra.mxu0 0.0
    %115 = vmatprep.mubr.f32.mxu0 0.0
    %116 = vmatmul.mubr.f32.gmra.mrb[0].mxu0 %v46
    %v117 = vpop.f32.mrb[0].mxu0
    %v118 = vadd.f32 0.0, %v117
    %v119 = vpop.f32.mrb[0].mxu0
    %120 = vdwg.mxu0
    %v122 = vsel %vm44, %v41, 0
    %v125 = vsel %vm44, %v43, 0
    %127 = vmatprep.subr.mxu0 0.0
    %128 = vmatpush1.xpose.msra.mxu0 %v125
    %129 = vmatprep.subr.mxu0 0.0
    %130 = vmatpush1.xpose.msra.mxu0 0.0
    %131 = vmatprep.subr.mxu0 0.0
    %132 = vmatpush1.xpose.msra.mxu0 0.0
    %133 = vmatprep.subr.mxu0 0.0
    %134 = vmatpush1.xpose.msra.mxu0 0.0
    %135 = vmatprep.subr.mxu0 0.0
    %136 = vmatpush1.xpose.msra.mxu0 0.0
    %137 = vmatprep.subr.mxu0 0.0
    %138 = vmatpush1.xpose.msra.mxu0 0.0
    %139 = vmatprep.subr.mxu0 0.0
    %140 = vmatpush1.xpose.msra.mxu0 0.0
    %141 = vmatprep.subr.mxu0 0.0
    %142 = vmatpush1.xpose.msra.mxu0 0.0
    %143 = vmatprep.subr.mxu0 0.0
    %144 = vmatpush1.xpose.msra.mxu0 0.0
    %145 = vmatprep.subr.mxu0 0.0
    %146 = vmatpush1.xpose.msra.mxu0 0.0
    %147 = vmatprep.subr.mxu0 0.0
    %148 = vmatpush1.xpose.msra.mxu0 0.0
    %149 = vmatprep.subr.mxu0 0.0
    %150 = vmatpush1.xpose.msra.mxu0 0.0
    %151 = vmatprep.subr.mxu0 0.0
    %152 = vmatpush1.xpose.msra.mxu0 0.0
    %153 = vmatprep.subr.mxu0 0.0
    %154 = vmatpush1.xpose.msra.mxu0 0.0
    %155 = vmatprep.subr.mxu0 0.0
    %156 = vmatpush1.xpose.msra.mxu0 0.0
    %157 = vmatprep.subr.mxu0 0.0
    %158 = vmatpush1.xpose.msra.mxu0 0.0
    %159 = vmatprep.subr.mxu0 0.0
    %160 = vmatpush1.xpose.msra.mxu0 0.0
    %161 = vmatprep.subr.mxu0 0.0
    %162 = vmatpush1.xpose.msra.mxu0 0.0
    %163 = vmatprep.subr.mxu0 0.0
    %164 = vmatpush1.xpose.msra.mxu0 0.0
    %165 = vmatprep.subr.mxu0 0.0
    %166 = vmatpush1.xpose.msra.mxu0 0.0
    %167 = vmatprep.subr.mxu0 0.0
    %168 = vmatpush1.xpose.msra.mxu0 0.0
    %169 = vmatprep.subr.mxu0 0.0
    %170 = vmatpush1.xpose.msra.mxu0 0.0
    %171 = vmatprep.subr.mxu0 0.0
    %172 = vmatpush1.xpose.msra.mxu0 0.0
    %173 = vmatprep.subr.mxu0 0.0
    %174 = vmatpush1.xpose.msra.mxu0 0.0
    %175 = vmatprep.subr.mxu0 0.0
    %176 = vmatpush1.xpose.msra.mxu0 0.0
    %177 = vmatprep.subr.mxu0 0.0
    %178 = vmatpush1.xpose.msra.mxu0 0.0
    %179 = vmatprep.subr.mxu0 0.0
    %180 = vmatpush1.xpose.msra.mxu0 0.0
    %181 = vmatprep.subr.mxu0 0.0
    %182 = vmatpush1.xpose.msra.mxu0 0.0
    %183 = vmatprep.subr.mxu0 0.0
    %184 = vmatpush1.xpose.msra.mxu0 0.0
    %185 = vmatprep.subr.mxu0 0.0
    %186 = vmatpush1.xpose.msra.mxu0 0.0
    %187 = vmatprep.subr.mxu0 0.0
    %188 = vmatpush1.xpose.msra.mxu0 0.0
    %189 = vmatprep.subr.mxu0 0.0
    %190 = vmatpush1.xpose.msra.mxu0 0.0
    %191 = vmatprep.mubr.f32.mxu0 0.0
    %192 = vmatmul.mubr.f32.gmra.mrb[0].mxu0 %v122
    %v193 = vpop.f32.mrb[0].mxu0
    %v194 = vadd.f32 0.0, %v193
    %v195 = vpop.f32.mrb[0].mxu0
    %196 = vdwg.mxu0
    %vm197 = vcmask 64512
    %198 = vst.msk [vmem:[#allocation7] sm:$0xff] %vm197, %v118
    %199 = vst.msk [vmem:[#allocation7 + $0x8] sm:$0xff] %vm197, %v194
    // Predicated region
    $region18: #{tpu_custom_call.1} parent=1 // pred_check
      _
    $region19: #{tpu_custom_call.1} parent=1 // pred_check_branch
      %201 = sbr.rel (0) target = $region21
    $region20: #{tpu_custom_call.1} parent=1 // pred_region
      %s203 = ssub.s32 256, 256
      %204 = vsyncadd [#allocation4], %s203
      %s205 = sshll.u32 [#allocation7], 4
      %s206 = int_to_ptr.vmem [resolvable:$true] %s205
      %211 = dma.vmem_to_hbm [thread:$0]  %s206, 256, %s2, [#allocation4], 128, 128, 8
    $region21: #{tpu_custom_call.1} parent=1 // pred_fallthru
      _
    // Predicated region
    $region22: #{tpu_custom_call.1} parent=1 // pred_check
      _
    $region23: #{tpu_custom_call.1} parent=1 // pred_check_branch
      %213 = sbr.rel (0) target = $region25
    $region24: #{tpu_custom_call.1} parent=1 // pred_region
      %214 = dma.done [#allocation4], 256
    $region25: #{tpu_custom_call.1} parent=1 // pred_fallthru
      _
    %215 = vsyncpa [#allocation3], 1
    %216 = vsyncpa [#allocation6], 1
    %217 = vsyncpa [#allocation4], 1

</llo_original>
